<compile_context>
chip_gen: v7x
topology: tpu7x:2x2x1
jax: 0.10.0
libtpu: 0.0.40
codegen_flags: <defaults>
</compile_context>

<pallas_src>
import math

import jax
import jax.numpy as jnp
from jax.experimental import pallas as pl
from jax.experimental.pallas import tpu as pltpu

_LN_EPS = 1e-5
_GAMMA = 0.95
_HALF_LOG_2PI = 0.5 * math.log(2.0 * math.pi)
_MXU_DTYPE = jnp.bfloat16          # MXU input dtype (accumulation stays f32)
_VMEM_LIMIT = 32 * 1024 * 1024     # explicit; sized so blocks also fit v7x


def _leaky_relu(x):
    return jnp.where(x > 0, x, 0.01 * x)


def _layernorm_fused(x, gamma, beta):
    # one-pass variance: E[x^2] - mu^2 (two back-to-back lane reductions)
    mu = jnp.mean(x, axis=-1, keepdims=True)
    ms = jnp.mean(x * x, axis=-1, keepdims=True)
    var = ms - mu * mu
    return (x - mu) * jax.lax.rsqrt(var + _LN_EPS) * gamma + beta


def _make_kernel(d_act):
    vscale = 1.0 / (1.0 - _GAMMA)   # precomputed; no runtime divide

    def kernel(obs_ref, eps_ref, w1_ref, w2_ref, wh_ref, pp_ref, out_ref):
        pp = pp_ref[...]                               # (16, 128) packed params
        b1, g1, be1 = pp[0:1, :], pp[1:2, :], pp[2:3, :]
        b2, g2, be2 = pp[3:4, :], pp[4:5, :], pp[5:6, :]
        bhead = pp[6:7, :]
        ws = pp[7:8, 0:d_act]
        bs = pp[8:9, 0:d_act]

        # trunk: two 128-wide layers (bf16 MXU inputs, f32 accum, f32 VPU work)
        x = obs_ref[...].astype(w1_ref.dtype)          # in-kernel bf16 cast (VPU)
        h = jnp.dot(x, w1_ref[...], preferred_element_type=jnp.float32) + b1
        h = _layernorm_fused(_leaky_relu(h), g1, be1)
        h = jnp.dot(h.astype(w2_ref.dtype), w2_ref[...],
                    preferred_element_type=jnp.float32) + b2
        h = _layernorm_fused(_leaky_relu(h), g2, be2)

        # fused heads: one 128x128 matmul, columns = [loc | cov | value | 0-pad]
        head = jnp.dot(h.astype(wh_ref.dtype), wh_ref[...],
                       preferred_element_type=jnp.float32) + bhead

        loc_raw = head[:, 0:d_act]
        cov_raw = head[:, d_act:2 * d_act]
        value = head[:, 2 * d_act:2 * d_act + 1] * vscale   # dv(h)/(1-gamma)

        aloc = ws * jnp.tanh(loc_raw) + bs
        acov = jax.nn.sigmoid(cov_raw)
        eps = eps_ref[...]
        act = aloc + acov * eps                  # Normal(aloc, acov) reparam sample
        # log_prob: (act - aloc)/acov == eps exactly by construction (no divide)
        logp = -0.5 * eps * eps - jnp.log(acov) - _HALF_LOG_2PI

        # single packed, lane-dense output block -> one dense output DMA per tile
        out_ref[...] = jnp.zeros_like(out_ref)
        out_ref[:, 0:d_act] = act
        out_ref[:, d_act:2 * d_act] = logp
        out_ref[:, 2 * d_act:3 * d_act] = aloc
        out_ref[:, 3 * d_act:4 * d_act] = acov
        out_ref[:, 4 * d_act:4 * d_act + 1] = value

    return kernel


def _pack_params(params, d_act):
    """Fused head weight (128,128) + packed small params (16,128)."""
    f32 = jnp.float32
    hidden = params["wloc"].shape[0]                    # 128
    whead = jnp.zeros((hidden, 128), f32)
    whead = whead.at[:, 0:d_act].set(params["wloc"])
    whead = whead.at[:, d_act:2 * d_act].set(params["wcov"])
    whead = whead.at[:, 2 * d_act:2 * d_act + 1].set(params["wv"])

    pp = jnp.zeros((16, 128), f32)
    pp = pp.at[0, :].set(params["b1"][0])
    pp = pp.at[1, :].set(params["g1"][0])
    pp = pp.at[2, :].set(params["be1"][0])
    pp = pp.at[3, :].set(params["b2"][0])
    pp = pp.at[4, :].set(params["g2"][0])
    pp = pp.at[5, :].set(params["be2"][0])
    pp = pp.at[6, 0:d_act].set(params["bloc"][0])
    pp = pp.at[6, d_act:2 * d_act].set(params["bcov"][0])
    pp = pp.at[6, 2 * d_act].set(params["bv"][0, 0])
    pp = pp.at[7, 0:d_act].set(params["ws"][0])
    pp = pp.at[8, 0:d_act].set(params["bs"][0])
    return whead, pp


def agent_forward(obs, params, eps):
    """obs: (B, ctx, d_obs) f32; eps: (B, d_act) N(0,1) noise.

    Returns (act, act_logprob, aloc, acov, value)."""
    B, ctx, dob = obs.shape
    din = ctx * dob
    d_act = params["wloc"].shape[1]
    out_w = pl.cdiv(4 * d_act + 1, 128) * 128           # lane-dense packed width

    obs_flat = obs.reshape(B, din)                       # free bitcast reshape; f32
    eps = eps.astype(jnp.float32)
    w1 = params["w1"].astype(_MXU_DTYPE)
    w2 = params["w2"].astype(_MXU_DTYPE)
    whead_f32, pp = _pack_params(params, d_act)
    whead = whead_f32.astype(_MXU_DTYPE)

    # Batch tiling: whole batch if small; otherwise 1024-row (8-aligned) tiles.
    # Per-step double-buffered obs+eps+output is ~1.8 MiB -> fits v7x VMEM.
    tb = B if B <= 1024 else 1024
    grid = (pl.cdiv(B, tb),)

    kernel = _make_kernel(d_act)

    bpe = lambda a: int(a.size) * a.dtype.itemsize
    cost = pl.CostEstimate(
        flops=2 * B * (din * 128 + 128 * 128 + 128 * 128),
        transcendentals=B * (3 * d_act + 2),
        bytes_accessed=int(bpe(obs_flat) + bpe(eps) + bpe(w1) + bpe(w2)
                           + bpe(whead) + bpe(pp) + B * out_w * 4),
    )

    slab = pl.pallas_call(
        kernel,
        grid=grid,
        in_specs=[
            pl.BlockSpec((tb, din), lambda i: (i, 0)),     # obs f32 (batch-tiled)
            pl.BlockSpec((tb, d_act), lambda i: (i, 0)),   # eps     (batch-tiled)
            pl.BlockSpec((din, 128), lambda i: (0, 0)),    # w1      (resident)
            pl.BlockSpec((128, 128), lambda i: (0, 0)),    # w2      (resident)
            pl.BlockSpec((128, 128), lambda i: (0, 0)),    # fused head W (resident)
            pl.BlockSpec((16, 128), lambda i: (0, 0)),     # packed small params
        ],
        out_specs=pl.BlockSpec((tb, out_w), lambda i: (i, 0)),
        out_shape=jax.ShapeDtypeStruct((B, out_w), jnp.float32),
        compiler_params=pltpu.CompilerParams(
            dimension_semantics=("parallel",),
            vmem_limit_bytes=_VMEM_LIMIT),
        cost_estimate=cost,
    )(obs_flat, eps, w1, w2, whead, pp)

    act = slab[:, 0:d_act]
    logp = slab[:, d_act:2 * d_act]
    aloc = slab[:, 2 * d_act:3 * d_act]
    acov = slab[:, 3 * d_act:4 * d_act]
    value = slab[:, 4 * d_act:4 * d_act + 1]
    return act, logp, aloc, acov, value


def make_params(key, ctx_size, d_obs, d_act, low, high):
    din = ctx_size * d_obs
    ks = jax.random.split(key, 10)
    return {
        "w1":   0.1 * jax.random.normal(ks[0], (din, 128), jnp.float32),
        "b1":   0.01 * jax.random.normal(ks[1], (1, 128), jnp.float32),
        "g1":   jnp.ones((1, 128), jnp.float32),
        "be1":  jnp.zeros((1, 128), jnp.float32),
        "w2":   0.1 * jax.random.normal(ks[2], (128, 128), jnp.float32),
        "b2":   0.01 * jax.random.normal(ks[3], (1, 128), jnp.float32),
        "g2":   jnp.ones((1, 128), jnp.float32),
        "be2":  jnp.zeros((1, 128), jnp.float32),
        "wloc": 0.1 * jax.random.normal(ks[4], (128, d_act), jnp.float32),
        "bloc": 0.01 * jax.random.normal(ks[5], (1, d_act), jnp.float32),
        "wcov": 0.1 * jax.random.normal(ks[6], (128, d_act), jnp.float32),
        "bcov": 0.01 * jax.random.normal(ks[7], (1, d_act), jnp.float32),
        "wv":   0.1 * jax.random.normal(ks[8], (128, 1), jnp.float32),
        "bv":   0.01 * jax.random.normal(ks[9], (1, 1), jnp.float32),
        "ws":   ((high - low) / 2.0).reshape(1, d_act).astype(jnp.float32),
        "bs":   ((high + low) / 2.0).reshape(1, d_act).astype(jnp.float32),
    }


def _layernorm_ref(x, gamma, beta):
    mu = jnp.mean(x, axis=-1, keepdims=True)
    var = jnp.mean((x - mu) ** 2, axis=-1, keepdims=True)
    return (x - mu) * jax.lax.rsqrt(var + _LN_EPS) * gamma + beta


def reference_forward(obs, params, eps, mxu_dtype=_MXU_DTYPE):
    """Pure-JAX reference replicating the torch semantics (same bf16 MXU casts)."""
    B = obs.shape[0]
    x = obs.reshape(B, -1)

    def mm(a, w):
        return jnp.dot(a.astype(mxu_dtype), w.astype(mxu_dtype),
                       preferred_element_type=jnp.float32)

    h = _leaky_relu(mm(x, params["w1"]) + params["b1"])
    h = _layernorm_ref(h, params["g1"], params["be1"])
    h = _leaky_relu(mm(h, params["w2"]) + params["b2"])
    h = _layernorm_ref(h, params["g2"], params["be2"])
    aloc = params["ws"] * jnp.tanh(mm(h, params["wloc"]) + params["bloc"]) + params["bs"]
    acov = jax.nn.sigmoid(mm(h, params["wcov"]) + params["bcov"])
    act = aloc + acov * eps
    logp = -0.5 * ((act - aloc) / acov) ** 2 - jnp.log(acov) - _HALF_LOG_2PI
    value = (mm(h, params["wv"]) + params["bv"]) / (1.0 - _GAMMA)
    return act, logp, aloc, acov, value


if __name__ == "__main__":
    B, ctx_size, d_obs, d_act = 8, 4, 8, 4
    low = jnp.full((d_act,), -2.0, jnp.float32)
    high = jnp.full((d_act,), 2.0, jnp.float32)

    key = jax.random.PRNGKey(0)
    k_obs, k_eps, k_par = jax.random.split(key, 3)
    obs = jax.random.normal(k_obs, (B, ctx_size, d_obs), jnp.float32)
    eps = jax.random.normal(k_eps, (B, d_act), jnp.float32)
    params = make_params(k_par, ctx_size, d_obs, d_act, low, high)

    outs = agent_forward(obs, params, eps)
    outs = jax.block_until_ready(outs)

    refs = reference_forward(obs, params, eps)
    names = ("act", "act_logprob", "aloc", "acov", "value")
    for name, o, r in zip(names, outs, refs):
        assert o.shape == r.shape, f"{name} shape mismatch: {o.shape} vs {r.shape}"
        assert jnp.allclose(o, r, rtol=2e-2, atol=2e-2), f"{name} mismatch vs reference"

    print("KERNEL_OK")
</pallas_src>

<mosaic_0001>
module attributes {stable_mosaic.version = 11 : i64} {
  func.func @kernel(%arg0: i32, %arg1: memref<8x32xf32, #tpu.memory_space<vmem>>, %arg2: memref<8x4xf32, #tpu.memory_space<vmem>>, %arg3: memref<32x128xbf16, #tpu.memory_space<vmem>>, %arg4: memref<128x128xbf16, #tpu.memory_space<vmem>>, %arg5: memref<128x128xbf16, #tpu.memory_space<vmem>>, %arg6: memref<16x128xf32, #tpu.memory_space<vmem>>, %arg7: memref<8x128xf32, #tpu.memory_space<vmem>>) attributes {dimension_semantics = [#tpu.dimension_semantics<parallel>], iteration_bounds = array<i64: 1>, scalar_prefetch = 0 : i64, scratch_operands = 0 : i64, tpu.core_type = #tpu.core_type<tc>, window_params = [{transform_indices = @transform_0, window_bounds = array<i64: 8, 32>}, {transform_indices = @transform_1, window_bounds = array<i64: 8, 4>}, {pipeline_mode = #tpu.pipeline_mode<synchronous>, transform_indices = @transform_2, window_bounds = array<i64: 32, 128>}, {pipeline_mode = #tpu.pipeline_mode<synchronous>, transform_indices = @transform_3, window_bounds = array<i64: 128, 128>}, {pipeline_mode = #tpu.pipeline_mode<synchronous>, transform_indices = @transform_4, window_bounds = array<i64: 128, 128>}, {pipeline_mode = #tpu.pipeline_mode<synchronous>, transform_indices = @transform_5, window_bounds = array<i64: 16, 128>}, {transform_indices = @transform_6, window_bounds = array<i64: 8, 128>}]} {
    %c0 = arith.constant 0 : index
    %c0_0 = arith.constant 0 : index
    %0 = vector.load %arg6[%c0, %c0_0] : memref<16x128xf32, #tpu.memory_space<vmem>>, vector<16x128xf32>
    %1 = vector.extract_strided_slice %0 {offsets = [0, 0], sizes = [1, 128], strides = [1, 1]} : vector<16x128xf32> to vector<1x128xf32>
    %2 = vector.extract_strided_slice %0 {offsets = [1, 0], sizes = [1, 128], strides = [1, 1]} : vector<16x128xf32> to vector<1x128xf32>
    %3 = vector.extract_strided_slice %0 {offsets = [2, 0], sizes = [1, 128], strides = [1, 1]} : vector<16x128xf32> to vector<1x128xf32>
    %4 = vector.extract_strided_slice %0 {offsets = [3, 0], sizes = [1, 128], strides = [1, 1]} : vector<16x128xf32> to vector<1x128xf32>
    %5 = vector.extract_strided_slice %0 {offsets = [4, 0], sizes = [1, 128], strides = [1, 1]} : vector<16x128xf32> to vector<1x128xf32>
    %6 = vector.extract_strided_slice %0 {offsets = [5, 0], sizes = [1, 128], strides = [1, 1]} : vector<16x128xf32> to vector<1x128xf32>
    %7 = vector.extract_strided_slice %0 {offsets = [6, 0], sizes = [1, 128], strides = [1, 1]} : vector<16x128xf32> to vector<1x128xf32>
    %8 = vector.extract_strided_slice %0 {offsets = [7, 0], sizes = [1, 4], strides = [1, 1]} : vector<16x128xf32> to vector<1x4xf32>
    %9 = vector.extract_strided_slice %0 {offsets = [8, 0], sizes = [1, 4], strides = [1, 1]} : vector<16x128xf32> to vector<1x4xf32>
    %c0_1 = arith.constant 0 : index
    %c0_2 = arith.constant 0 : index
    %10 = vector.load %arg1[%c0_1, %c0_2] : memref<8x32xf32, #tpu.memory_space<vmem>>, vector<8x32xf32>
    %11 = arith.truncf %10 : vector<8x32xf32> to vector<8x32xbf16>
    %c0_3 = arith.constant 0 : index
    %c0_4 = arith.constant 0 : index
    %12 = vector.load %arg3[%c0_3, %c0_4] : memref<32x128xbf16, #tpu.memory_space<vmem>>, vector<32x128xbf16>
    %cst = arith.constant dense<0.000000e+00> : vector<8x128xf32>
    %13 = tpu.matmul %11, %12, %cst {dimension_numbers = #tpu.dot_dimension_numbers<[1], [0], [0], [1], [0, 0, 1, 1], [], []>} : vector<8x32xbf16>, vector<32x128xbf16>, vector<8x128xf32> -> vector<8x128xf32>
    %14 = vector.broadcast %1 : vector<1x128xf32> to vector<8x128xf32>
    %15 = arith.addf %13, %14 : vector<8x128xf32>
    %cst_5 = arith.constant 0.000000e+00 : f32
    %16 = vector.broadcast %cst_5 : f32 to vector<8x128xf32>
    %17 = arith.cmpf ogt, %15, %16 : vector<8x128xf32>
    %cst_6 = arith.constant 0.00999999977 : f32
    %18 = vector.broadcast %cst_6 : f32 to vector<8x128xf32>
    %19 = arith.mulf %18, %15 : vector<8x128xf32>
    %20 = arith.select %17, %15, %19 : vector<8x128xi1>, vector<8x128xf32>
    %cst_7 = arith.constant dense<0.000000e+00> : vector<8xf32>
    %21 = vector.multi_reduction <add>, %20, %cst_7 [1] : vector<8x128xf32> to vector<8xf32>
    %22 = vector.shape_cast %21 : vector<8xf32> to vector<8x1xf32>
    %cst_8 = arith.constant 1.280000e+02 : f32
    %23 = vector.broadcast %cst_8 : f32 to vector<8x1xf32>
    %24 = arith.divf %22, %23 : vector<8x1xf32>
    %25 = arith.mulf %20, %20 : vector<8x128xf32>
    %cst_9 = arith.constant dense<0.000000e+00> : vector<8xf32>
    %26 = vector.multi_reduction <add>, %25, %cst_9 [1] : vector<8x128xf32> to vector<8xf32>
    %27 = vector.shape_cast %26 : vector<8xf32> to vector<8x1xf32>
    %cst_10 = arith.constant 1.280000e+02 : f32
    %28 = vector.broadcast %cst_10 : f32 to vector<8x1xf32>
    %29 = arith.divf %27, %28 : vector<8x1xf32>
    %30 = arith.mulf %24, %24 : vector<8x1xf32>
    %31 = arith.subf %29, %30 : vector<8x1xf32>
    %32 = vector.broadcast %24 : vector<8x1xf32> to vector<8x128xf32>
    %33 = arith.subf %20, %32 : vector<8x128xf32>
    %cst_11 = arith.constant 9.99999974E-6 : f32
    %34 = vector.broadcast %cst_11 : f32 to vector<8x1xf32>
    %35 = arith.addf %31, %34 : vector<8x1xf32>
    %36 = math.rsqrt %35 : vector<8x1xf32>
    %37 = vector.broadcast %36 : vector<8x1xf32> to vector<8x128xf32>
    %38 = arith.mulf %33, %37 : vector<8x128xf32>
    %39 = vector.broadcast %2 : vector<1x128xf32> to vector<8x128xf32>
    %40 = arith.mulf %38, %39 : vector<8x128xf32>
    %41 = vector.broadcast %3 : vector<1x128xf32> to vector<8x128xf32>
    %42 = arith.addf %40, %41 : vector<8x128xf32>
    %43 = arith.truncf %42 : vector<8x128xf32> to vector<8x128xbf16>
    %c0_12 = arith.constant 0 : index
    %c0_13 = arith.constant 0 : index
    %44 = vector.load %arg4[%c0_12, %c0_13] : memref<128x128xbf16, #tpu.memory_space<vmem>>, vector<128x128xbf16>
    %cst_14 = arith.constant dense<0.000000e+00> : vector<8x128xf32>
    %45 = tpu.matmul %43, %44, %cst_14 {dimension_numbers = #tpu.dot_dimension_numbers<[1], [0], [0], [1], [0, 0, 1, 1], [], []>} : vector<8x128xbf16>, vector<128x128xbf16>, vector<8x128xf32> -> vector<8x128xf32>
    %46 = vector.broadcast %4 : vector<1x128xf32> to vector<8x128xf32>
    %47 = arith.addf %45, %46 : vector<8x128xf32>
    %cst_15 = arith.constant 0.000000e+00 : f32
    %48 = vector.broadcast %cst_15 : f32 to vector<8x128xf32>
    %49 = arith.cmpf ogt, %47, %48 : vector<8x128xf32>
    %cst_16 = arith.constant 0.00999999977 : f32
    %50 = vector.broadcast %cst_16 : f32 to vector<8x128xf32>
    %51 = arith.mulf %50, %47 : vector<8x128xf32>
    %52 = arith.select %49, %47, %51 : vector<8x128xi1>, vector<8x128xf32>
    %cst_17 = arith.constant dense<0.000000e+00> : vector<8xf32>
    %53 = vector.multi_reduction <add>, %52, %cst_17 [1] : vector<8x128xf32> to vector<8xf32>
    %54 = vector.shape_cast %53 : vector<8xf32> to vector<8x1xf32>
    %cst_18 = arith.constant 1.280000e+02 : f32
    %55 = vector.broadcast %cst_18 : f32 to vector<8x1xf32>
    %56 = arith.divf %54, %55 : vector<8x1xf32>
    %57 = arith.mulf %52, %52 : vector<8x128xf32>
    %cst_19 = arith.constant dense<0.000000e+00> : vector<8xf32>
    %58 = vector.multi_reduction <add>, %57, %cst_19 [1] : vector<8x128xf32> to vector<8xf32>
    %59 = vector.shape_cast %58 : vector<8xf32> to vector<8x1xf32>
    %cst_20 = arith.constant 1.280000e+02 : f32
    %60 = vector.broadcast %cst_20 : f32 to vector<8x1xf32>
    %61 = arith.divf %59, %60 : vector<8x1xf32>
    %62 = arith.mulf %56, %56 : vector<8x1xf32>
    %63 = arith.subf %61, %62 : vector<8x1xf32>
    %64 = vector.broadcast %56 : vector<8x1xf32> to vector<8x128xf32>
    %65 = arith.subf %52, %64 : vector<8x128xf32>
    %cst_21 = arith.constant 9.99999974E-6 : f32
    %66 = vector.broadcast %cst_21 : f32 to vector<8x1xf32>
    %67 = arith.addf %63, %66 : vector<8x1xf32>
    %68 = math.rsqrt %67 : vector<8x1xf32>
    %69 = vector.broadcast %68 : vector<8x1xf32> to vector<8x128xf32>
    %70 = arith.mulf %65, %69 : vector<8x128xf32>
    %71 = vector.broadcast %5 : vector<1x128xf32> to vector<8x128xf32>
    %72 = arith.mulf %70, %71 : vector<8x128xf32>
    %73 = vector.broadcast %6 : vector<1x128xf32> to vector<8x128xf32>
    %74 = arith.addf %72, %73 : vector<8x128xf32>
    %75 = arith.truncf %74 : vector<8x128xf32> to vector<8x128xbf16>
    %c0_22 = arith.constant 0 : index
    %c0_23 = arith.constant 0 : index
    %76 = vector.load %arg5[%c0_22, %c0_23] : memref<128x128xbf16, #tpu.memory_space<vmem>>, vector<128x128xbf16>
    %cst_24 = arith.constant dense<0.000000e+00> : vector<8x128xf32>
    %77 = tpu.matmul %75, %76, %cst_24 {dimension_numbers = #tpu.dot_dimension_numbers<[1], [0], [0], [1], [0, 0, 1, 1], [], []>} : vector<8x128xbf16>, vector<128x128xbf16>, vector<8x128xf32> -> vector<8x128xf32>
    %78 = vector.broadcast %7 : vector<1x128xf32> to vector<8x128xf32>
    %79 = arith.addf %77, %78 : vector<8x128xf32>
    %80 = vector.extract_strided_slice %79 {offsets = [0, 0], sizes = [8, 4], strides = [1, 1]} : vector<8x128xf32> to vector<8x4xf32>
    %81 = vector.extract_strided_slice %79 {offsets = [0, 4], sizes = [8, 4], strides = [1, 1]} : vector<8x128xf32> to vector<8x4xf32>
    %82 = vector.extract_strided_slice %79 {offsets = [0, 8], sizes = [8, 1], strides = [1, 1]} : vector<8x128xf32> to vector<8x1xf32>
    %cst_25 = arith.constant 2.000000e+01 : f32
    %83 = vector.broadcast %cst_25 : f32 to vector<8x1xf32>
    %84 = arith.mulf %82, %83 : vector<8x1xf32>
    %85 = math.tanh %80 : vector<8x4xf32>
    %86 = vector.broadcast %8 : vector<1x4xf32> to vector<8x4xf32>
    %87 = arith.mulf %86, %85 : vector<8x4xf32>
    %88 = vector.broadcast %9 : vector<1x4xf32> to vector<8x4xf32>
    %89 = arith.addf %87, %88 : vector<8x4xf32>
    %90 = arith.negf %81 : vector<8x4xf32>
    %91 = math.exp %90 : vector<8x4xf32>
    %cst_26 = arith.constant 1.000000e+00 : f32
    %92 = vector.broadcast %cst_26 : f32 to vector<8x4xf32>
    %93 = arith.addf %92, %91 : vector<8x4xf32>
    %94 = arith.divf %92, %93 : vector<8x4xf32>
    %c0_27 = arith.constant 0 : index
    %c0_28 = arith.constant 0 : index
    %95 = vector.load %arg2[%c0_27, %c0_28] : memref<8x4xf32, #tpu.memory_space<vmem>>, vector<8x4xf32>
    %96 = arith.mulf %94, %95 : vector<8x4xf32>
    %97 = arith.addf %89, %96 : vector<8x4xf32>
    %cst_29 = arith.constant -5.000000e-01 : f32
    %98 = vector.broadcast %cst_29 : f32 to vector<8x4xf32>
    %99 = arith.mulf %98, %95 : vector<8x4xf32>
    %100 = arith.mulf %99, %95 : vector<8x4xf32>
    %101 = math.log %94 : vector<8x4xf32>
    %102 = arith.subf %100, %101 : vector<8x4xf32>
    %cst_30 = arith.constant 0.918938517 : f32
    %103 = vector.broadcast %cst_30 : f32 to vector<8x4xf32>
    %104 = arith.subf %102, %103 : vector<8x4xf32>
    %cst_31 = arith.constant 0.000000e+00 : f32
    %105 = vector.broadcast %cst_31 : f32 to vector<8x128xf32>
    %c0_32 = arith.constant 0 : index
    %c0_33 = arith.constant 0 : index
    %106 = vector.load %arg7[%c0_32, %c0_33] : memref<8x128xf32, #tpu.memory_space<vmem>>, vector<8x128xf32>
    tpu.vector_store %arg7[%c0_32, %c0_33], %105 {strides = array<i32>} : memref<8x128xf32, #tpu.memory_space<vmem>>, vector<8x128xf32>,
    %c0_34 = arith.constant 0 : index
    %c0_35 = arith.constant 0 : index
    %107 = vector.load %arg7[%c0_34, %c0_35] : memref<8x128xf32, #tpu.memory_space<vmem>>, vector<8x4xf32>
    tpu.vector_store %arg7[%c0_34, %c0_35], %97 {strides = array<i32>} : memref<8x128xf32, #tpu.memory_space<vmem>>, vector<8x4xf32>,
    %c0_36 = arith.constant 0 : index
    %c4 = arith.constant 4 : index
    %108 = vector.load %arg7[%c0_36, %c4] : memref<8x128xf32, #tpu.memory_space<vmem>>, vector<8x4xf32>
    tpu.vector_store %arg7[%c0_36, %c4], %104 {strides = array<i32>} : memref<8x128xf32, #tpu.memory_space<vmem>>, vector<8x4xf32>,
    %c0_37 = arith.constant 0 : index
    %c8 = arith.constant 8 : index
    %109 = vector.load %arg7[%c0_37, %c8] : memref<8x128xf32, #tpu.memory_space<vmem>>, vector<8x4xf32>
    tpu.vector_store %arg7[%c0_37, %c8], %89 {strides = array<i32>} : memref<8x128xf32, #tpu.memory_space<vmem>>, vector<8x4xf32>,
    %c0_38 = arith.constant 0 : index
    %c12 = arith.constant 12 : index
    %110 = vector.load %arg7[%c0_38, %c12] : memref<8x128xf32, #tpu.memory_space<vmem>>, vector<8x4xf32>
    tpu.vector_store %arg7[%c0_38, %c12], %94 {strides = array<i32>} : memref<8x128xf32, #tpu.memory_space<vmem>>, vector<8x4xf32>,
    %c0_39 = arith.constant 0 : index
    %c16 = arith.constant 16 : index
    %111 = vector.load %arg7[%c0_39, %c16] : memref<8x128xf32, #tpu.memory_space<vmem>>, vector<8x1xf32>
    tpu.vector_store %arg7[%c0_39, %c16], %84 {strides = array<i32>} : memref<8x128xf32, #tpu.memory_space<vmem>>, vector<8x1xf32>,
    return
  }
  func.func @transform_0(%arg0: i32) -> (i32, i32) {
    %c0_i32 = arith.constant 0 : i32
    %c0_i32_0 = arith.constant 0 : i32
    return %arg0, %c0_i32 : i32, i32
  }
  func.func @transform_1(%arg0: i32) -> (i32, i32) {
    %c0_i32 = arith.constant 0 : i32
    %c0_i32_0 = arith.constant 0 : i32
    return %arg0, %c0_i32 : i32, i32
  }
  func.func @transform_2(%arg0: i32) -> (i32, i32) {
    %c0_i32 = arith.constant 0 : i32
    %c0_i32_0 = arith.constant 0 : i32
    %c0_i32_1 = arith.constant 0 : i32
    return %c0_i32, %c0_i32_0 : i32, i32
  }
  func.func @transform_3(%arg0: i32) -> (i32, i32) {
    %c0_i32 = arith.constant 0 : i32
    %c0_i32_0 = arith.constant 0 : i32
    %c0_i32_1 = arith.constant 0 : i32
    return %c0_i32, %c0_i32_0 : i32, i32
  }
  func.func @transform_4(%arg0: i32) -> (i32, i32) {
    %c0_i32 = arith.constant 0 : i32
    %c0_i32_0 = arith.constant 0 : i32
    %c0_i32_1 = arith.constant 0 : i32
    return %c0_i32, %c0_i32_0 : i32, i32
  }
  func.func @transform_5(%arg0: i32) -> (i32, i32) {
    %c0_i32 = arith.constant 0 : i32
    %c0_i32_0 = arith.constant 0 : i32
    %c0_i32_1 = arith.constant 0 : i32
    return %c0_i32, %c0_i32_0 : i32, i32
  }
  func.func @transform_6(%arg0: i32) -> (i32, i32) {
    %c0_i32 = arith.constant 0 : i32
    %c0_i32_0 = arith.constant 0 : i32
    return %arg0, %c0_i32 : i32, i32
  }
}

</mosaic_0001>

<llo_original>
// kernel: tpu_custom_call.1
$region0: #{tpu_custom_call.1}
  #allocation0 [shape = 'u32[]', space=smem, size = 0x4, offset = 0x4, fixed_abs, tag = 'smem constant byte address 0x4 - core index']
  #allocation1 [shape = 'u32[144,128]{1,0:T(1,128)}', space=vmem, size = 0x12000, scoped, tag = 'internal scratch']
  %s0 = inlined_call_operand.hbm [shape: f32[8,32], index: 0, kind: input, shape index: {}]
  %s1 = inlined_call_operand.vmem [shape: f32[8,4], index: 1, kind: input, shape index: {}]
  %s2 = inlined_call_operand.vmem [shape: bf16[32,128], index: 2, kind: input, shape index: {}]
  %s3 = inlined_call_operand.hbm [shape: bf16[128,128], index: 3, kind: input, shape index: {}]
  %s4 = inlined_call_operand.hbm [shape: bf16[128,128], index: 4, kind: input, shape index: {}]
  %s5 = inlined_call_operand.hbm [shape: f32[16,128], index: 5, kind: input, shape index: {}]
  %s6 = inlined_call_operand.hbm [shape: f32[8,128], index: 6, kind: output, shape index: {}]
  %s7 = sld [smem:[#allocation0]]
  $region50: #{tpu_custom_call.1} parent=0
    _
  %s9 = ssub.s32 1, %s7
  %s10 = scalar_select 0, %s9, %s7
  $region1: #{tpu_custom_call.1} parent=0
    #allocation2 [shape = 'u8[4096]{0}', space=vmem, size = 0x1000, scoped, tag = 'input window, operand 0, single buffered']
    #allocation3 [shape = 's32[1]{0}', space=sflag, size = 0x4, scoped, tag = 'scoped memory for tpu_custom_call.1']
    #allocation4 [shape = 's32[1]{0}', space=sflag, size = 0x4, scoped, tag = 'scoped memory for tpu_custom_call.1']
    #allocation5 [shape = 'u8[32768]{0}', space=vmem, size = 0x8000, scoped, tag = 'input window, operand 3, single buffered']
    #allocation6 [shape = 's32[1]{0}', space=sflag, size = 0x4, scoped, tag = 'scoped memory for tpu_custom_call.1']
    #allocation7 [shape = 'u8[32768]{0}', space=vmem, size = 0x8000, scoped, tag = 'input window, operand 4, single buffered']
    #allocation8 [shape = 'u8[8192]{0}', space=vmem, size = 0x2000, scoped, tag = 'input window, operand 5, single buffered']
    #allocation9 [shape = 's32[1]{0}', space=sflag, size = 0x4, scoped, tag = 'scoped memory for tpu_custom_call.1']
    #allocation10 [shape = 'u8[4096]{0}', space=vmem, size = 0x1000, scoped, tag = 'output window, operand 0, single buffered']
    %11 = vsyncpa [#allocation3], 0
    %12 = vsyncpa [#allocation6], 0
    %13 = vsyncpa [#allocation9], 0
    %14 = vsyncpa [#allocation4], 0
    // Predicated region
    $region2: #{tpu_custom_call.1} parent=1 // pred_check
      _
    $region3: #{tpu_custom_call.1} parent=1 // pred_check_branch
      %16 = sbr.rel (0) target = $region5
    $region4: #{tpu_custom_call.1} parent=1 // pred_region
      %s18 = ssub.s32 128, 128
      %19 = vsyncadd [#allocation3], %s18
      %s21 = sshll.u32 [#allocation2], 4
      %s22 = int_to_ptr.vmem [resolvable:$true] %s21
      %24 = dma.hbm_to_vmem [thread:$0]  %s0, 128, %s22, [#allocation3]
    $region5: #{tpu_custom_call.1} parent=1 // pred_fallthru
      _
    // Predicated region
    $region6: #{tpu_custom_call.1} parent=1 // pred_check
      _
    $region7: #{tpu_custom_call.1} parent=1 // pred_check_branch
      %26 = sbr.rel (0) target = $region9
    $region8: #{tpu_custom_call.1} parent=1 // pred_region
      _
    $region9: #{tpu_custom_call.1} parent=1 // pred_fallthru
      _
    // Predicated region
    $region10: #{tpu_custom_call.1} parent=1 // pred_check
      _
    $region11: #{tpu_custom_call.1} parent=1 // pred_check_branch
      %28 = sbr.rel (0) target = $region13
    $region12: #{tpu_custom_call.1} parent=1 // pred_region
      _
    $region13: #{tpu_custom_call.1} parent=1 // pred_fallthru
      _
    // Predicated region
    $region14: #{tpu_custom_call.1} parent=1 // pred_check
      _
    $region15: #{tpu_custom_call.1} parent=1 // pred_check_branch
      %30 = sbr.rel (0) target = $region17
    $region16: #{tpu_custom_call.1} parent=1 // pred_region
      %s32 = ssub.s32 1024, 1024
      %33 = vsyncadd [#allocation6], %s32
      %s34 = sshll.u32 [#allocation5], 4
      %s35 = int_to_ptr.vmem [resolvable:$true] %s34
      %40 = dma.hbm_to_vmem [thread:$0]  %s3, 1024, %s35, [#allocation6], 64, 64, 4
    $region17: #{tpu_custom_call.1} parent=1 // pred_fallthru
      _
    // Predicated region
    $region18: #{tpu_custom_call.1} parent=1 // pred_check
      _
    $region19: #{tpu_custom_call.1} parent=1 // pred_check_branch
      %42 = sbr.rel (0) target = $region21
    $region20: #{tpu_custom_call.1} parent=1 // pred_region
      %s44 = ssub.s32 1024, 1024
      %45 = vsyncadd [#allocation6], %s44
      %s46 = sshll.u32 [#allocation7], 4
      %s47 = int_to_ptr.vmem [resolvable:$true] %s46
      %52 = dma.hbm_to_vmem [thread:$0]  %s4, 1024, %s47, [#allocation6], 64, 64, 4
    $region21: #{tpu_custom_call.1} parent=1 // pred_fallthru
      _
    // Predicated region
    $region22: #{tpu_custom_call.1} parent=1 // pred_check
      _
    $region23: #{tpu_custom_call.1} parent=1 // pred_check_branch
      %54 = sbr.rel (0) target = $region25
    $region24: #{tpu_custom_call.1} parent=1 // pred_region
      %s56 = ssub.s32 256, 256
      %57 = vsyncadd [#allocation9], %s56
      %s58 = sshll.u32 [#allocation8], 4
      %s59 = int_to_ptr.vmem [resolvable:$true] %s58
      %64 = dma.hbm_to_vmem [thread:$0]  %s5, 256, %s59, [#allocation9], 128, 128, 8
    $region25: #{tpu_custom_call.1} parent=1 // pred_fallthru
      _
    // Predicated region
    $region26: #{tpu_custom_call.1} parent=1 // pred_check
      _
    $region27: #{tpu_custom_call.1} parent=1 // pred_check_branch
      %66 = sbr.rel (0) target = $region29
    $region28: #{tpu_custom_call.1} parent=1 // pred_region
      %67 = dma.done [#allocation3], 128
    $region29: #{tpu_custom_call.1} parent=1 // pred_fallthru
      _
    // Predicated region
    $region30: #{tpu_custom_call.1} parent=1 // pred_check
      _
    $region31: #{tpu_custom_call.1} parent=1 // pred_check_branch
      %69 = sbr.rel (0) target = $region33
    $region32: #{tpu_custom_call.1} parent=1 // pred_region
      %70 = dma.done [#allocation6], 1024
    $region33: #{tpu_custom_call.1} parent=1 // pred_fallthru
      _
    // Predicated region
    $region34: #{tpu_custom_call.1} parent=1 // pred_check
      _
    $region35: #{tpu_custom_call.1} parent=1 // pred_check_branch
      %72 = sbr.rel (0) target = $region37
    $region36: #{tpu_custom_call.1} parent=1 // pred_region
      %73 = dma.done [#allocation6], 1024
    $region37: #{tpu_custom_call.1} parent=1 // pred_fallthru
      _
    // Predicated region
    $region38: #{tpu_custom_call.1} parent=1 // pred_check
      _
    $region39: #{tpu_custom_call.1} parent=1 // pred_check_branch
      %75 = sbr.rel (0) target = $region41
    $region40: #{tpu_custom_call.1} parent=1 // pred_region
      %76 = dma.done [#allocation9], 256
    $region41: #{tpu_custom_call.1} parent=1 // pred_fallthru
      _
    %v78 = vld [vmem:[#allocation8] sm:$0xff]
    %v79 = vld [vmem:[#allocation8 + $0x8] sm:$0xff]
    %v80 = vld [vmem:[#allocation2] sm:$0xff]
    %v81 = vpack.c.bf16 %v80, %v80
    %v82 = vld [vmem:[%s2] sm:$0xf]
    %v83 = vld [vmem:[%s2 + $0x4] sm:$0xf]
    %v84 = vld [vmem:[%s2 + $0x8] sm:$0xf]
    %v85 = vld [vmem:[%s2 + $0xc] sm:$0xf]
    %v86 = vlaneseq
    %v87 = vshrl.u32 %v86, 7
    %v88 = vsub.s32 0, %v87
    %v89 = vrot.slane %v78, %v88
    %v94 = vunpack.c.l.b16 %v82
    %v95 = vunpack.c.l.b16 %v83
    %v96 = vunpack.c.l.b16 %v84
    %v97 = vunpack.c.l.b16 %v85
    %v98 = vpack.c.b16 %v95, %v94
    %v99 = vpack.c.b16 %v97, %v96
    %vm102 = vcmask 261120
    %v104 = vsel %vm102, %v81, 0
    %106 = vmatprep.subr.bf16.mxu0 0
    %107 = vmatpush1.bf16.msra.mxu0 %v98
    %108 = vmatprep.subr.bf16.mxu0 0
    %109 = vmatpush1.bf16.msra.mxu0 %v99
    %110 = vmatprep.subr.bf16.mxu0 0
    %111 = vmatpush1.bf16.msra.mxu0 0
    %112 = vmatprep.subr.bf16.mxu0 0
    %113 = vmatpush1.bf16.msra.mxu0 0
    %114 = vmatprep.subr.bf16.mxu0 0
    %115 = vmatpush1.bf16.msra.mxu0 0
    %116 = vmatprep.subr.bf16.mxu0 0
    %117 = vmatpush1.bf16.msra.mxu0 0
    %118 = vmatprep.subr.bf16.mxu0 0
    %119 = vmatpush1.bf16.msra.mxu0 0
    %120 = vmatprep.subr.bf16.mxu0 0
    %121 = vmatpush1.bf16.msra.mxu0 0
    %122 = vmatprep.subr.bf16.mxu0 0
    %123 = vmatpush1.bf16.msra.mxu0 0
    %124 = vmatprep.subr.bf16.mxu0 0
    %125 = vmatpush1.bf16.msra.mxu0 0
    %126 = vmatprep.subr.bf16.mxu0 0
    %127 = vmatpush1.bf16.msra.mxu0 0
    %128 = vmatprep.subr.bf16.mxu0 0
    %129 = vmatpush1.bf16.msra.mxu0 0
    %130 = vmatprep.subr.bf16.mxu0 0
    %131 = vmatpush1.bf16.msra.mxu0 0
    %132 = vmatprep.subr.bf16.mxu0 0
    %133 = vmatpush1.bf16.msra.mxu0 0
    %134 = vmatprep.subr.bf16.mxu0 0
    %135 = vmatpush1.bf16.msra.mxu0 0
    %136 = vmatprep.subr.bf16.mxu0 0
    %137 = vmatpush1.bf16.msra.mxu0 0
    %138 = vmatprep.mubr.bf16.mxu0 0
    %139 = vmatmul.mubr.bf16.gmra.mrb[0].mxu0 %v104
    %v140 = vpop.f32.mrb[0].mxu0
    %v141 = vadd.f32 %v89, %v140
    %v142 = vpop.f32.mrb[0].mxu0
    %v143 = vpop.f32.mrb[0].mxu0
    %v144 = vpop.f32.mrb[0].mxu0
    %145 = vdwg.mxu0
    %vm146 = vcmp.gt.f32.partialorder %v141, 0.0
    %v147 = vmul.f32 %v141, 0.01
    %v148 = vsel %vm146, %v141, %v147
    %149 = vadd.xlane.f32.xlu0 %v148
    %v150 = vpop.xlane.xlu0 %149
    %v151 = vrcp.pop 128.0
    %v152 = vmul.f32 %v150, %v151
    %v153 = vmul.f32 %v148, %v148
    %154 = vadd.xlane.f32.xlu0 %v153
    %v155 = vpop.xlane.xlu0 %154
    %v156 = vmul.f32 %v155, %v151
    %v157 = vmul.f32 %v152, %v152
    %v158 = vsub.f32 %v156, %v157
    %v159 = vsub.f32 %v148, %v152
    %v160 = vadd.f32 %v158, 1e-05
    %v161 = vrsqrt.pop %v160
    %v162 = vmul.f32 %v159, %v161
    %v163 = vlaneseq
    %v164 = vshrl.u32 %v163, 7
    %v165 = vsub.s32 1, %v164
    %v166 = vrot.slane %v78, %v165
    %v167 = vmul.f32 %v162, %v166
    %v168 = vlaneseq
    %v169 = vshrl.u32 %v168, 7
    %v170 = vsub.s32 2, %v169
    %v171 = vrot.slane %v78, %v170
    %v172 = vadd.f32 %v167, %v171
    %v173 = vpack.c.bf16 %v172, %v172
    %v174 = vld [vmem:[#allocation5] sm:$0xf]
    %v175 = vld [vmem:[#allocation5 + $0x4] sm:$0xf]
    %v176 = vld [vmem:[#allocation5 + $0x8] sm:$0xf]
    %v177 = vld [vmem:[#allocation5 + $0xc] sm:$0xf]
    %v178 = vld [vmem:[#allocation5 + $0x10] sm:$0xf]
    %v179 = vld [vmem:[#allocation5 + $0x14] sm:$0xf]
    %v180 = vld [vmem:[#allocation5 + $0x18] sm:$0xf]
    %v181 = vld [vmem:[#allocation5 + $0x1c] sm:$0xf]
    %v182 = vld [vmem:[#allocation5 + $0x20] sm:$0xf]
    %v183 = vld [vmem:[#allocation5 + $0x24] sm:$0xf]
    %v184 = vld [vmem:[#allocation5 + $0x28] sm:$0xf]
    %v185 = vld [vmem:[#allocation5 + $0x2c] sm:$0xf]
    %v186 = vld [vmem:[#allocation5 + $0x30] sm:$0xf]
    %v187 = vld [vmem:[#allocation5 + $0x34] sm:$0xf]
    %v188 = vld [vmem:[#allocation5 + $0x38] sm:$0xf]
    %v189 = vld [vmem:[#allocation5 + $0x3c] sm:$0xf]
    %v190 = vlaneseq
    %v191 = vshrl.u32 %v190, 7
    %v192 = vsub.s32 3, %v191
    %v193 = vrot.slane %v78, %v192
    %v210 = vunpack.c.l.b16 %v174
    %v211 = vunpack.c.l.b16 %v175
    %v212 = vunpack.c.l.b16 %v176
    %v213 = vunpack.c.l.b16 %v177
    %v214 = vunpack.c.l.b16 %v178
    %v215 = vunpack.c.l.b16 %v179
    %v216 = vunpack.c.l.b16 %v180
    %v217 = vunpack.c.l.b16 %v181
    %v218 = vunpack.c.l.b16 %v182
    %v219 = vunpack.c.l.b16 %v183
    %v220 = vunpack.c.l.b16 %v184
    %v221 = vunpack.c.l.b16 %v185
    %v222 = vunpack.c.l.b16 %v186
    %v223 = vunpack.c.l.b16 %v187
    %v224 = vunpack.c.l.b16 %v188
    %v225 = vunpack.c.l.b16 %v189
    %v226 = vpack.c.b16 %v211, %v210
    %v227 = vpack.c.b16 %v213, %v212
    %v228 = vpack.c.b16 %v215, %v214
    %v229 = vpack.c.b16 %v217, %v216
    %v230 = vpack.c.b16 %v219, %v218
    %v231 = vpack.c.b16 %v221, %v220
    %v232 = vpack.c.b16 %v223, %v222
    %v233 = vpack.c.b16 %v225, %v224
    %242 = vmatprep.subr.bf16.mxu0 0
    %243 = vmatpush1.bf16.msra.mxu0 %v226
    %244 = vmatprep.subr.bf16.mxu0 0
    %245 = vmatpush1.bf16.msra.mxu0 %v227
    %246 = vmatprep.subr.bf16.mxu0 0
    %247 = vmatpush1.bf16.msra.mxu0 %v228
    %248 = vmatprep.subr.bf16.mxu0 0
    %249 = vmatpush1.bf16.msra.mxu0 %v229
    %250 = vmatprep.subr.bf16.mxu0 0
    %251 = vmatpush1.bf16.msra.mxu0 %v230
    %252 = vmatprep.subr.bf16.mxu0 0
    %253 = vmatpush1.bf16.msra.mxu0 %v231
    %254 = vmatprep.subr.bf16.mxu0 0
    %255 = vmatpush1.bf16.msra.mxu0 %v232
    %256 = vmatprep.subr.bf16.mxu0 0
    %257 = vmatpush1.bf16.msra.mxu0 %v233
    %258 = vmatprep.subr.bf16.mxu0 0
    %259 = vmatpush1.bf16.msra.mxu0 0
    %260 = vmatprep.subr.bf16.mxu0 0
    %261 = vmatpush1.bf16.msra.mxu0 0
    %262 = vmatprep.subr.bf16.mxu0 0
    %263 = vmatpush1.bf16.msra.mxu0 0
    %264 = vmatprep.subr.bf16.mxu0 0
    %265 = vmatpush1.bf16.msra.mxu0 0
    %266 = vmatprep.subr.bf16.mxu0 0
    %267 = vmatpush1.bf16.msra.mxu0 0
    %268 = vmatprep.subr.bf16.mxu0 0
    %269 = vmatpush1.bf16.msra.mxu0 0
    %270 = vmatprep.subr.bf16.mxu0 0
    %271 = vmatpush1.bf16.msra.mxu0 0
    %272 = vmatprep.subr.bf16.mxu0 0
    %273 = vmatpush1.bf16.msra.mxu0 0
    %274 = vmatprep.mubr.bf16.mxu0 0
    %275 = vmatmul.mubr.bf16.gmra.mrb[0].mxu0 %v173
    %v276 = vpop.f32.mrb[0].mxu0
    %v277 = vadd.f32 %v193, %v276
    %v278 = vpop.f32.mrb[0].mxu0
    %v279 = vpop.f32.mrb[0].mxu0
    %v280 = vpop.f32.mrb[0].mxu0
    %281 = vdwg.mxu0
    %vm282 = vcmp.gt.f32.partialorder %v277, 0.0
    %v283 = vmul.f32 %v277, 0.01
    %v284 = vsel %vm282, %v277, %v283
    %285 = vadd.xlane.f32.xlu0 %v284
    %v286 = vpop.xlane.xlu0 %285
    %v287 = vmul.f32 %v286, %v151
    %v288 = vmul.f32 %v284, %v284
    %289 = vadd.xlane.f32.xlu0 %v288
    %v290 = vpop.xlane.xlu0 %289
    %v291 = vmul.f32 %v290, %v151
    %v292 = vmul.f32 %v287, %v287
    %v293 = vsub.f32 %v291, %v292
    %v294 = vsub.f32 %v284, %v287
    %v295 = vadd.f32 %v293, 1e-05
    %v296 = vrsqrt.pop %v295
    %v297 = vmul.f32 %v294, %v296
    %v298 = vlaneseq
    %v299 = vshrl.u32 %v298, 7
    %v300 = vsub.s32 4, %v299
    %v301 = vrot.slane %v78, %v300
    %v302 = vmul.f32 %v297, %v301
    %v303 = vlaneseq
    %v304 = vshrl.u32 %v303, 7
    %v305 = vsub.s32 5, %v304
    %v306 = vrot.slane %v78, %v305
    %v307 = vadd.f32 %v302, %v306
    %v308 = vpack.c.bf16 %v307, %v307
    %v309 = vld [vmem:[#allocation7] sm:$0xf]
    %v310 = vld [vmem:[#allocation7 + $0x4] sm:$0xf]
    %v311 = vld [vmem:[#allocation7 + $0x8] sm:$0xf]
    %v312 = vld [vmem:[#allocation7 + $0xc] sm:$0xf]
    %v313 = vld [vmem:[#allocation7 + $0x10] sm:$0xf]
    %v314 = vld [vmem:[#allocation7 + $0x14] sm:$0xf]
    %v315 = vld [vmem:[#allocation7 + $0x18] sm:$0xf]
    %v316 = vld [vmem:[#allocation7 + $0x1c] sm:$0xf]
    %v317 = vld [vmem:[#allocation7 + $0x20] sm:$0xf]
    %v318 = vld [vmem:[#allocation7 + $0x24] sm:$0xf]
    %v319 = vld [vmem:[#allocation7 + $0x28] sm:$0xf]
    %v320 = vld [vmem:[#allocation7 + $0x2c] sm:$0xf]
    %v321 = vld [vmem:[#allocation7 + $0x30] sm:$0xf]
    %v322 = vld [vmem:[#allocation7 + $0x34] sm:$0xf]
    %v323 = vld [vmem:[#allocation7 + $0x38] sm:$0xf]
    %v324 = vld [vmem:[#allocation7 + $0x3c] sm:$0xf]
    %v325 = vlaneseq
    %v326 = vshrl.u32 %v325, 7
    %v327 = vsub.s32 6, %v326
    %v328 = vrot.slane %v78, %v327
    %v345 = vunpack.c.l.b16 %v309
    %v346 = vunpack.c.l.b16 %v310
    %v347 = vunpack.c.l.b16 %v311
    %v348 = vunpack.c.l.b16 %v312
    %v349 = vunpack.c.l.b16 %v313
    %v350 = vunpack.c.l.b16 %v314
    %v351 = vunpack.c.l.b16 %v315
    %v352 = vunpack.c.l.b16 %v316
    %v353 = vunpack.c.l.b16 %v317
    %v354 = vunpack.c.l.b16 %v318
    %v355 = vunpack.c.l.b16 %v319
    %v356 = vunpack.c.l.b16 %v320
    %v357 = vunpack.c.l.b16 %v321
    %v358 = vunpack.c.l.b16 %v322
    %v359 = vunpack.c.l.b16 %v323
    %v360 = vunpack.c.l.b16 %v324
    %v361 = vpack.c.b16 %v346, %v345
    %v362 = vpack.c.b16 %v348, %v347
    %v363 = vpack.c.b16 %v350, %v349
    %v364 = vpack.c.b16 %v352, %v351
    %v365 = vpack.c.b16 %v354, %v353
    %v366 = vpack.c.b16 %v356, %v355
    %v367 = vpack.c.b16 %v358, %v357
    %v368 = vpack.c.b16 %v360, %v359
    %377 = vmatprep.subr.bf16.mxu0 0
    %378 = vmatpush1.bf16.msra.mxu0 %v361
    %379 = vmatprep.subr.bf16.mxu0 0
    %380 = vmatpush1.bf16.msra.mxu0 %v362
    %381 = vmatprep.subr.bf16.mxu0 0
    %382 = vmatpush1.bf16.msra.mxu0 %v363
    %383 = vmatprep.subr.bf16.mxu0 0
    %384 = vmatpush1.bf16.msra.mxu0 %v364
    %385 = vmatprep.subr.bf16.mxu0 0
    %386 = vmatpush1.bf16.msra.mxu0 %v365
    %387 = vmatprep.subr.bf16.mxu0 0
    %388 = vmatpush1.bf16.msra.mxu0 %v366
    %389 = vmatprep.subr.bf16.mxu0 0
    %390 = vmatpush1.bf16.msra.mxu0 %v367
    %391 = vmatprep.subr.bf16.mxu0 0
    %392 = vmatpush1.bf16.msra.mxu0 %v368
    %393 = vmatprep.subr.bf16.mxu0 0
    %394 = vmatpush1.bf16.msra.mxu0 0
    %395 = vmatprep.subr.bf16.mxu0 0
    %396 = vmatpush1.bf16.msra.mxu0 0
    %397 = vmatprep.subr.bf16.mxu0 0
    %398 = vmatpush1.bf16.msra.mxu0 0
    %399 = vmatprep.subr.bf16.mxu0 0
    %400 = vmatpush1.bf16.msra.mxu0 0
    %401 = vmatprep.subr.bf16.mxu0 0
    %402 = vmatpush1.bf16.msra.mxu0 0
    %403 = vmatprep.subr.bf16.mxu0 0
    %404 = vmatpush1.bf16.msra.mxu0 0
    %405 = vmatprep.subr.bf16.mxu0 0
    %406 = vmatpush1.bf16.msra.mxu0 0
    %407 = vmatprep.subr.bf16.mxu0 0
    %408 = vmatpush1.bf16.msra.mxu0 0
    %409 = vmatprep.mubr.bf16.mxu0 0
    %410 = vmatmul.mubr.bf16.gmra.mrb[0].mxu0 %v308
    %v411 = vpop.f32.mrb[0].mxu0
    %v412 = vadd.f32 %v328, %v411
    %v413 = vpop.f32.mrb[0].mxu0
    %v414 = vpop.f32.mrb[0].mxu0
    %v415 = vpop.f32.mrb[0].mxu0
    %416 = vdwg.mxu0
    %v417 = vmul.f32 %v412, 20.0
    %v418 = vtanh.pop %v412
    %v419 = vlaneseq
    %v420 = vshrl.u32 %v419, 7
    %v421 = vsub.s32 7, %v420
    %v422 = vrot.slane %v78, %v421
    %v423 = vmul.f32 %v422, %v418
    %v424 = vlaneseq
    %v425 = vshrl.u32 %v424, 7
    %v426 = vsub.s32 0, %v425
    %v427 = vrot.slane %v79, %v426
    %v428 = vadd.f32 %v423, %v427
    %v429 = vxor.u32 %v412, 2147483648
    %v430 = vmul.f32 %v429, 1.442695
    %v431 = vpow.pop %v430
    %v432 = vadd.f32 %v431, 1.0
    %v433 = vrcp.pop %v432
    %v434 = vmul.f32 1.0, %v433
    %v435 = vld [vmem:[%s1] sm:$0xff]
    %437 = vrot.lane.b32.xlu0 %v435, 4
    %v438 = vpop.permute.xlu0 %437
    %v440 = vmul.f32 %v434, %v438
    %442 = vrot.lane.b32.xlu0 %v440, 124
    %v443 = vpop.permute.xlu0 %442
    %v445 = vadd.f32 %v428, %v443
    %v446 = vmul.f32 %v435, -0.5
    %v447 = vmul.f32 %v446, %v435
    %v448 = vlog2.pop %v434
    %v449 = vmul.f32 %v448, 0.6931472
    %451 = vrot.lane.b32.xlu0 %v449, 124
    %v452 = vpop.permute.xlu0 %451
    %v454 = vsub.f32 %v447, %v452
    %v455 = vsub.f32 %v454, 0.9189385
    %456 = vst [vmem:[#allocation10] sm:$0xff] 0.0
    %vm457 = vcmask 31744
    %458 = vst.msk [vmem:[#allocation10] sm:$0xff] %vm457, %v445
    %460 = vrot.lane.b32.xlu0 %v455, 4
    %v461 = vpop.permute.xlu0 %460
    %vm463 = vcmask 64544
    %464 = vst.msk [vmem:[#allocation10] sm:$0xff] %vm463, %v461
    %466 = vrot.lane.b32.xlu0 %v428, 8
    %v467 = vpop.permute.xlu0 %466
    %vm469 = vcmask 97344
    %470 = vst.msk [vmem:[#allocation10] sm:$0xff] %vm469, %v467
    %472 = vrot.lane.b32.xlu0 %v434, 8
    %v473 = vpop.permute.xlu0 %472
    %vm475 = vcmask 130144
    %476 = vst.msk [vmem:[#allocation10] sm:$0xff] %vm475, %v473
    %478 = vrot.lane.b32.xlu0 %v417, 8
    %v479 = vpop.permute.xlu0 %478
    %vm481 = vcmask 138368
    %482 = vst.msk [vmem:[#allocation10] sm:$0xff] %vm481, %v479
    // Predicated region
    $region42: #{tpu_custom_call.1} parent=1 // pred_check
      _
    $region43: #{tpu_custom_call.1} parent=1 // pred_check_branch
      %484 = sbr.rel (0) target = $region45
    $region44: #{tpu_custom_call.1} parent=1 // pred_region
      %s486 = ssub.s32 128, 128
      %487 = vsyncadd [#allocation4], %s486
      %s489 = sshll.u32 [#allocation10], 4
      %s490 = int_to_ptr.vmem [resolvable:$true] %s489
      %492 = dma.vmem_to_hbm [thread:$0]  %s490, 128, %s6, [#allocation4]
    $region45: #{tpu_custom_call.1} parent=1 // pred_fallthru
      _
    // Predicated region
    $region46: #{tpu_custom_call.1} parent=1 // pred_check
      _
    $region47: #{tpu_custom_call.1} parent=1 // pred_check_branch
      %494 = sbr.rel (0) target = $region49
    $region48: #{tpu_custom_call.1} parent=1 // pred_region
      %495 = dma.done [#allocation4], 128
    $region49: #{tpu_custom_call.1} parent=1 // pred_fallthru
      _
    %496 = vsyncpa [#allocation3], 1
    %497 = vsyncpa [#allocation6], 1
    %498 = vsyncpa [#allocation9], 1
    %499 = vsyncpa [#allocation4], 1

</llo_original>
